<compile_context>
chip_gen: v6e
topology: v6e:2x2x1
jax: 0.10.0
libtpu: 0.0.40
codegen_flags: <defaults>
</compile_context>

<pallas_src>
import math
import functools

import jax
import jax.numpy as jnp
from jax.experimental import pallas as pl
from jax.experimental.pallas import tpu as pltpu


def _largest_divisor_leq(n, cap):
    t = max(1, min(n, cap))
    while n % t:
        t -= 1
    return t


# ----------------------- stage 1: branch affine + GELU (lane dense) -----------------------

def _gelu_exact(z):
    """Exact-form GELU; erf via Abramowitz & Stegun 7.1.26 (|abs err| < 1.5e-7).

    The divide goes to the EUP via pl.reciprocal(approx=True).  One Newton step is kept
    (3 VALU ops/element): the downstream BatchNorm normalization amplifies absolute GELU
    error by ~1/std(gelu), so the refined reciprocal keeps the end-to-end error ~1e-6
    instead of a worst case near the 1e-2 budget.
    """
    a1, a2, a3, a4, a5 = 0.254829592, -0.284496736, 1.421413741, -1.453152027, 1.061405429
    p = 0.3275911
    zz = z * 0.7071067811865476                  # z / sqrt(2)
    sgn = jnp.where(zz >= 0.0, 1.0, -1.0)
    za = jnp.abs(zz)
    d = 1.0 + p * za
    t = pl.reciprocal(d, approx=True)
    t = t * (2.0 - d * t)                        # one Newton refinement of the EUP estimate
    poly = ((((a5 * t + a4) * t + a3) * t + a2) * t + a1) * t
    erf = sgn * (1.0 - poly * jnp.exp(-za * za))
    return 0.5 * z * (1.0 + erf)


def _affine_gelu_kernel(p_ref, x_ref, y_ref):
    # p_ref (SMEM f32[2]): [0] = branch_w * channel_weight, [1] = branch_b * channel_weight
    y_ref[...] = _gelu_exact(x_ref[...] * p_ref[0] + p_ref[1])


# ------------------- stage 2: BatchNorm affine + collapsed 2x2 conv ----------------------

def _bn_conv_kernel(p_ref, y_ref, o_ref, buf_ref, *, H, W, WO, WPAD):
    """BN affine + collapsed (pw1 . pw2 . channel_weight) 2x2 / pad=1 conv on a batch tile.

    p_ref (SMEM f32[7]): [0]=bn_scale [1]=bn_shift [2:6]=w_eff (k = kh*2+kw) [6]=b_eff
    buf_ref: (TB, H+2, WPAD) zero-extended image, 128-lane aligned:
        buf[b, 1+r, c] = ybn[b, r, c] for r < H, c < W; rows 0 / H+1 and lanes >= W are 0.
    """
    scale, shift = p_ref[0], p_ref[1]
    w00, w01, w10, w11 = p_ref[2], p_ref[3], p_ref[4], p_ref[5]
    b_eff = p_ref[6]
    HO = H + 1
    tb = y_ref.shape[0]

    # Per-element BatchNorm affine.  Only the multiplicative part could be folded into
    # w_eff (zero padding happens *after* BN), but that requires shift/scale which is
    # ill-defined at bn_gamma == 0; this stage is memory-bound so the multiply is free.
    ybn = y_ref[...] * scale + shift                                        # (tb, H, W)

    # Build the zero-extended image with lane-aligned stores only (no full zero pass,
    # no lane-offset-1 store).  Every byte of the scratch is written each iteration, so
    # there is no reliance on prior scratch state (megacore-safe).
    zrow = jnp.zeros((tb, 1, WPAD), jnp.float32)
    buf_ref[:, 0:1, :] = zrow                                               # top pad row
    buf_ref[:, H + 1:H + 2, :] = zrow                                       # bottom pad row
    buf_ref[:, 1:H + 1, W:WPAD] = jnp.zeros((tb, H, WPAD - W), jnp.float32)  # right pad lanes
    buf_ref[:, 1:H + 1, 0:W] = ybn                                          # data, lane offset 0

    # 2x2 / pad=1 conv as four weighted taps.  Row taps: two HO-row windows of the
    # scratch.  Column (kw = kernel col 0 -> j-1) taps: XLU lane rotate by +1; the
    # wrapped lane is the known-zero column 127 (W <= 127), so the roll is bit-exact.
    a = buf_ref[:, 0:HO, :]               # y_ext[i-1, j]
    bv = buf_ref[:, 1:HO + 1, :]          # y_ext[i,   j]
    conv = (w01 * a + w00 * pltpu.roll(a, shift=1, axis=2)
            + w11 * bv + w10 * pltpu.roll(bv, shift=1, axis=2)) + b_eff
    # Exact-width store (single masked vst per row); no padded output slab.
    o_ref[...] = conv[:, :, :WO]


# ----------------------------------- wrapper ---------------------------------------------

def vsfe_forward(x, params, *, tb_elem_cap=512, tb_conv_cap=128):
    """x: (B, 1, L) float32 with L a perfect square.  Returns (B, 1, H+1, W+1) float32."""
    B, cin, L = x.shape
    assert cin == 1, "VSFE forward only type-checks for out_c == 1"
    H = W = int(round(math.sqrt(L)))
    assert H * W == L, f"L={L} must be a perfect square"
    HO, WO = H + 1, W + 1
    WPAD = 128
    assert W <= WPAD - 1, "spatial width must fit one 128-lane tile (roll-wrap needs a zero col)"

    f32 = jnp.float32
    br_w = params['br_w'].reshape(()).astype(f32)
    br_b = params['br_b'].reshape(()).astype(f32)
    cw = params['cw'].reshape(()).astype(f32)
    bn_g = params['bn_g'].reshape(()).astype(f32)
    bn_b = params['bn_b'].reshape(()).astype(f32)

    # ---- stage 1: branch affine (channel weight folded) + GELU, lane-dense over (B, L)
    p1 = jnp.stack([br_w * cw, br_b * cw])
    tb1 = _largest_divisor_leq(B, tb_elem_cap)
    y = pl.pallas_call(
        _affine_gelu_kernel,
        out_shape=jax.ShapeDtypeStruct((B, L), f32),
        grid=(B // tb1,),
        in_specs=[pl.BlockSpec(memory_space=pltpu.MemorySpace.SMEM),
                  pl.BlockSpec((tb1, L), lambda i: (i, 0))],
        out_specs=pl.BlockSpec((tb1, L), lambda i: (i, 0)),
        compiler_params=pltpu.CompilerParams(dimension_semantics=("parallel",)),
    )(p1, x.reshape(B, L).astype(f32))

    # ---- BatchNorm1d(1) training-mode statistics, hoisted out of the kernels (global
    # reduction over B*L) and computed two-pass for numerical robustness at large B*L.
    mean = jnp.mean(y)
    var = jnp.mean(jnp.square(y - mean))
    bn_scale = bn_g * jax.lax.rsqrt(var + 1e-5)
    bn_shift = bn_b - mean * bn_scale

    # ---- collapse pw1 (2x2, 1->3) + pw2 (1x1, 3->1) + final channel weighting into one
    # effective 2x2 kernel (computed once; ~16 scalar flops in XLA).
    pw2w = params['pw2_w'].reshape(3).astype(f32)
    w_eff = cw * (pw2w @ params['pw1_w'].reshape(3, 4).astype(f32))         # k = kh*2 + kw
    b_eff = cw * (params['pw2_b'].reshape(()).astype(f32)
                  + pw2w @ params['pw1_b'].astype(f32))
    p2 = jnp.concatenate([jnp.stack([bn_scale, bn_shift]), w_eff, b_eff.reshape(1)])

    # ---- stage 2: BN affine + collapsed conv; the (H, W) image view is only
    # materialized per batch tile when filling the conv scratch.
    tb2 = _largest_divisor_leq(B, tb_conv_cap)
    out = pl.pallas_call(
        functools.partial(_bn_conv_kernel, H=H, W=W, WO=WO, WPAD=WPAD),
        out_shape=jax.ShapeDtypeStruct((B, HO, WO), f32),
        grid=(B // tb2,),
        in_specs=[pl.BlockSpec(memory_space=pltpu.MemorySpace.SMEM),
                  pl.BlockSpec((tb2, H, W), lambda i: (i, 0, 0))],
        out_specs=pl.BlockSpec((tb2, HO, WO), lambda i: (i, 0, 0)),
        scratch_shapes=[pltpu.VMEM((tb2, H + 2, WPAD), f32)],
        compiler_params=pltpu.CompilerParams(dimension_semantics=("parallel",)),
    )(p2, y.reshape(B, H, W))

    return out.reshape(B, 1, HO, WO)


# --------------------------- pure-JAX reference & params ---------------------------------

def vsfe_reference(x, p):
    """Pure-JAX (XLA) reference mirroring the PyTorch forward for out_c == 1."""
    B, _, L = x.shape
    H = W = int(round(math.sqrt(L)))
    y = p['br_w'][0, 0, 0] * x + p['br_b'][0]                        # Conv1d(1,1,k=1)
    y = y * p['cw'].reshape(1, -1, 1)
    y = 0.5 * y * (1.0 + jax.scipy.special.erf(y / math.sqrt(2.0)))  # exact GELU
    mean = jnp.mean(y, axis=(0, 2), keepdims=True)
    var = jnp.mean((y - mean) ** 2, axis=(0, 2), keepdims=True)
    y = (y - mean) / jnp.sqrt(var + 1e-5) * p['bn_g'].reshape(1, -1, 1) \
        + p['bn_b'].reshape(1, -1, 1)
    img = y.reshape(B, 1, H, W)
    h1 = jax.lax.conv_general_dilated(img, p['pw1_w'], (1, 1), ((1, 1), (1, 1)),
                                      dimension_numbers=('NCHW', 'OIHW', 'NCHW'))
    h1 = h1 + p['pw1_b'].reshape(1, 3, 1, 1)
    h2 = jax.lax.conv_general_dilated(h1, p['pw2_w'], (1, 1), ((0, 0), (0, 0)),
                                      dimension_numbers=('NCHW', 'OIHW', 'NCHW'))
    h2 = h2 + p['pw2_b'].reshape(1, 1, 1, 1)
    return h2 * p['cw'].reshape(1, -1, 1, 1)


def init_params(key, out_c=1):
    ks = jax.random.split(key, 9)
    return dict(
        br_w=0.5 * jax.random.normal(ks[0], (1, 1, 1), jnp.float32),       # Conv1d(1,1,1) weight
        br_b=0.1 * jax.random.normal(ks[1], (1,), jnp.float32),            # Conv1d bias
        cw=1.0 + 0.3 * jax.random.normal(ks[2], (out_c,), jnp.float32),    # channel_weights
        bn_g=1.0 + 0.2 * jax.random.normal(ks[3], (out_c,), jnp.float32),  # BN gamma
        bn_b=0.1 * jax.random.normal(ks[4], (out_c,), jnp.float32),        # BN beta
        pw1_w=0.5 * jax.random.normal(ks[5], (3, 1, 2, 2), jnp.float32),   # Conv2d(1->3, k=2)
        pw1_b=0.1 * jax.random.normal(ks[6], (3,), jnp.float32),
        pw2_w=0.5 * jax.random.normal(ks[7], (1, 3, 1, 1), jnp.float32),   # Conv2d(3->1, k=1)
        pw2_b=0.1 * jax.random.normal(ks[8], (1,), jnp.float32),
    )


if __name__ == "__main__":
    key = jax.random.PRNGKey(0)
    kx, kp = jax.random.split(key)
    params = init_params(kp, out_c=1)
    fwd = jax.jit(vsfe_forward)

    H = W = 16
    L = H * W
    # B=2 matches the module demo size; B=1024 additionally exercises the multi-step
    # batch-parallel grids of both stages (both still tiny / launch-bound).
    for B in (2, 1024):
        x = jax.random.normal(jax.random.fold_in(kx, B), (B, 1, L), jnp.float32)
        out = jax.block_until_ready(fwd(x, params))
        assert out.shape == (B, 1, H + 1, W + 1), out.shape
        ref = vsfe_reference(x, params)
        err = float(jnp.max(jnp.abs(out - ref)))
        # Shifted-tap conv is exact; residual error is from the (Newton-refined) erf
        # approximation and two-pass-vs-exact BN statistics.
        if err > 1e-2:
            raise AssertionError(f"B={B}: mismatch vs reference, max abs err {err}")
    print("KERNEL_OK")
</pallas_src>

<mosaic_0001>
module attributes {stable_mosaic.version = 11 : i64} {
  func.func @_affine_gelu_kernel(%arg0: i32, %arg1: memref<2xf32, #tpu.memory_space<smem>>, %arg2: memref<2x256xf32, #tpu.memory_space<vmem>>, %arg3: memref<2x256xf32, #tpu.memory_space<vmem>>) attributes {dimension_semantics = [#tpu.dimension_semantics<parallel>], iteration_bounds = array<i64: 1>, scalar_prefetch = 0 : i64, scratch_operands = 0 : i64, tpu.core_type = #tpu.core_type<tc>, window_params = [{transform_indices = @transform_0, window_bounds = array<i64: 2>}, {transform_indices = @transform_1, window_bounds = array<i64: 2, 256>}, {transform_indices = @transform_2, window_bounds = array<i64: 2, 256>}]} {
    %c0 = arith.constant 0 : index
    %c0_0 = arith.constant 0 : index
    %0 = vector.load %arg2[%c0, %c0_0] : memref<2x256xf32, #tpu.memory_space<vmem>>, vector<2x256xf32>
    %c0_1 = arith.constant 0 : index
    %1 = memref.load %arg1[%c0_1] : memref<2xf32, #tpu.memory_space<smem>>
    %2 = vector.broadcast %1 : f32 to vector<2x256xf32>
    %3 = arith.mulf %0, %2 : vector<2x256xf32>
    %c1 = arith.constant 1 : index
    %4 = memref.load %arg1[%c1] : memref<2xf32, #tpu.memory_space<smem>>
    %5 = vector.broadcast %4 : f32 to vector<2x256xf32>
    %6 = arith.addf %3, %5 : vector<2x256xf32>
    %cst = arith.constant 0.707106769 : f32
    %7 = vector.broadcast %cst : f32 to vector<2x256xf32>
    %8 = arith.mulf %6, %7 : vector<2x256xf32>
    %cst_2 = arith.constant 0.000000e+00 : f32
    %9 = vector.broadcast %cst_2 : f32 to vector<2x256xf32>
    %10 = arith.cmpf oge, %8, %9 : vector<2x256xf32>
    %cst_3 = arith.constant 1.000000e+00 : f32
    %cst_4 = arith.constant -1.000000e+00 : f32
    %11 = vector.broadcast %cst_3 : f32 to vector<2x256xf32>
    %12 = vector.broadcast %cst_4 : f32 to vector<2x256xf32>
    %13 = arith.select %10, %11, %12 : vector<2x256xi1>, vector<2x256xf32>
    %14 = math.absf %8 : vector<2x256xf32>
    %cst_5 = arith.constant 0.327591091 : f32
    %15 = vector.broadcast %cst_5 : f32 to vector<2x256xf32>
    %16 = arith.mulf %15, %14 : vector<2x256xf32>
    %cst_6 = arith.constant 1.000000e+00 : f32
    %17 = vector.broadcast %cst_6 : f32 to vector<2x256xf32>
    %18 = arith.addf %17, %16 : vector<2x256xf32>
    %19 = tpu.reciprocal %18 {approx = true} : vector<2x256xf32> -> vector<2x256xf32>
    %20 = arith.mulf %18, %19 : vector<2x256xf32>
    %cst_7 = arith.constant 2.000000e+00 : f32
    %21 = vector.broadcast %cst_7 : f32 to vector<2x256xf32>
    %22 = arith.subf %21, %20 : vector<2x256xf32>
    %23 = arith.mulf %19, %22 : vector<2x256xf32>
    %cst_8 = arith.constant 1.06140542 : f32
    %24 = vector.broadcast %cst_8 : f32 to vector<2x256xf32>
    %25 = arith.mulf %24, %23 : vector<2x256xf32>
    %cst_9 = arith.constant -1.45315206 : f32
    %26 = vector.broadcast %cst_9 : f32 to vector<2x256xf32>
    %27 = arith.addf %25, %26 : vector<2x256xf32>
    %28 = arith.mulf %27, %23 : vector<2x256xf32>
    %cst_10 = arith.constant 1.42141378 : f32
    %29 = vector.broadcast %cst_10 : f32 to vector<2x256xf32>
    %30 = arith.addf %28, %29 : vector<2x256xf32>
    %31 = arith.mulf %30, %23 : vector<2x256xf32>
    %cst_11 = arith.constant -0.284496725 : f32
    %32 = vector.broadcast %cst_11 : f32 to vector<2x256xf32>
    %33 = arith.addf %31, %32 : vector<2x256xf32>
    %34 = arith.mulf %33, %23 : vector<2x256xf32>
    %cst_12 = arith.constant 0.254829586 : f32
    %35 = vector.broadcast %cst_12 : f32 to vector<2x256xf32>
    %36 = arith.addf %34, %35 : vector<2x256xf32>
    %37 = arith.mulf %36, %23 : vector<2x256xf32>
    %cst_13 = arith.constant 0.000000e+00 : f32
    %38 = vector.broadcast %cst_13 : f32 to vector<2x256xf32>
    %39 = arith.subf %38, %14 : vector<2x256xf32>
    %40 = arith.mulf %39, %14 : vector<2x256xf32>
    %41 = math.exp %40 : vector<2x256xf32>
    %42 = arith.mulf %37, %41 : vector<2x256xf32>
    %cst_14 = arith.constant 1.000000e+00 : f32
    %43 = vector.broadcast %cst_14 : f32 to vector<2x256xf32>
    %44 = arith.subf %43, %42 : vector<2x256xf32>
    %45 = arith.mulf %13, %44 : vector<2x256xf32>
    %cst_15 = arith.constant 5.000000e-01 : f32
    %46 = vector.broadcast %cst_15 : f32 to vector<2x256xf32>
    %47 = arith.mulf %46, %6 : vector<2x256xf32>
    %cst_16 = arith.constant 1.000000e+00 : f32
    %48 = vector.broadcast %cst_16 : f32 to vector<2x256xf32>
    %49 = arith.addf %48, %45 : vector<2x256xf32>
    %50 = arith.mulf %47, %49 : vector<2x256xf32>
    %c0_17 = arith.constant 0 : index
    %c0_18 = arith.constant 0 : index
    %51 = vector.load %arg3[%c0_17, %c0_18] : memref<2x256xf32, #tpu.memory_space<vmem>>, vector<2x256xf32>
    tpu.vector_store %arg3[%c0_17, %c0_18], %50 {strides = array<i32>} : memref<2x256xf32, #tpu.memory_space<vmem>>, vector<2x256xf32>,
    return
  }
  func.func @transform_0(%arg0: i32) -> i32 {
    %c0_i32 = arith.constant 0 : i32
    %c0_i32_0 = arith.constant 0 : i32
    return %c0_i32 : i32
  }
  func.func @transform_1(%arg0: i32) -> (i32, i32) {
    %c0_i32 = arith.constant 0 : i32
    %c0_i32_0 = arith.constant 0 : i32
    return %arg0, %c0_i32 : i32, i32
  }
  func.func @transform_2(%arg0: i32) -> (i32, i32) {
    %c0_i32 = arith.constant 0 : i32
    %c0_i32_0 = arith.constant 0 : i32
    return %arg0, %c0_i32 : i32, i32
  }
}

module attributes {stable_mosaic.version = 11 : i64} {
  func.func @_bn_conv_kernel(%arg0: i32, %arg1: memref<7xf32, #tpu.memory_space<smem>>, %arg2: memref<2x16x16xf32, #tpu.memory_space<vmem>>, %arg3: memref<2x17x17xf32, #tpu.memory_space<vmem>>, %arg4: memref<2x18x128xf32, #tpu.memory_space<vmem>>) attributes {dimension_semantics = [#tpu.dimension_semantics<parallel>], iteration_bounds = array<i64: 1>, scalar_prefetch = 0 : i64, scratch_operands = 1 : i64, tpu.core_type = #tpu.core_type<tc>, window_params = [{transform_indices = @transform_0, window_bounds = array<i64: 7>}, {transform_indices = @transform_1, window_bounds = array<i64: 2, 16, 16>}, {transform_indices = @transform_2, window_bounds = array<i64: 2, 17, 17>}]} {
    %c0 = arith.constant 0 : index
    %0 = memref.load %arg1[%c0] : memref<7xf32, #tpu.memory_space<smem>>
    %c1 = arith.constant 1 : index
    %1 = memref.load %arg1[%c1] : memref<7xf32, #tpu.memory_space<smem>>
    %c2 = arith.constant 2 : index
    %2 = memref.load %arg1[%c2] : memref<7xf32, #tpu.memory_space<smem>>
    %c3 = arith.constant 3 : index
    %3 = memref.load %arg1[%c3] : memref<7xf32, #tpu.memory_space<smem>>
    %c4 = arith.constant 4 : index
    %4 = memref.load %arg1[%c4] : memref<7xf32, #tpu.memory_space<smem>>
    %c5 = arith.constant 5 : index
    %5 = memref.load %arg1[%c5] : memref<7xf32, #tpu.memory_space<smem>>
    %c6 = arith.constant 6 : index
    %6 = memref.load %arg1[%c6] : memref<7xf32, #tpu.memory_space<smem>>
    %c0_0 = arith.constant 0 : index
    %c0_1 = arith.constant 0 : index
    %c0_2 = arith.constant 0 : index
    %7 = vector.load %arg2[%c0_0, %c0_1, %c0_2] : memref<2x16x16xf32, #tpu.memory_space<vmem>>, vector<2x16x16xf32>
    %8 = vector.broadcast %0 : f32 to vector<2x16x16xf32>
    %9 = arith.mulf %7, %8 : vector<2x16x16xf32>
    %10 = vector.broadcast %1 : f32 to vector<2x16x16xf32>
    %11 = arith.addf %9, %10 : vector<2x16x16xf32>
    %cst = arith.constant 0.000000e+00 : f32
    %12 = vector.broadcast %cst : f32 to vector<2x1x128xf32>
    %c0_3 = arith.constant 0 : index
    %c0_4 = arith.constant 0 : index
    %c0_5 = arith.constant 0 : index
    %13 = vector.load %arg4[%c0_3, %c0_4, %c0_5] : memref<2x18x128xf32, #tpu.memory_space<vmem>>, vector<2x1x128xf32>
    tpu.vector_store %arg4[%c0_3, %c0_4, %c0_5], %12 {strides = array<i32>} : memref<2x18x128xf32, #tpu.memory_space<vmem>>, vector<2x1x128xf32>,
    %c0_6 = arith.constant 0 : index
    %c17 = arith.constant 17 : index
    %c0_7 = arith.constant 0 : index
    %14 = vector.load %arg4[%c0_6, %c17, %c0_7] : memref<2x18x128xf32, #tpu.memory_space<vmem>>, vector<2x1x128xf32>
    tpu.vector_store %arg4[%c0_6, %c17, %c0_7], %12 {strides = array<i32>} : memref<2x18x128xf32, #tpu.memory_space<vmem>>, vector<2x1x128xf32>,
    %cst_8 = arith.constant 0.000000e+00 : f32
    %15 = vector.broadcast %cst_8 : f32 to vector<2x16x112xf32>
    %c0_9 = arith.constant 0 : index
    %c1_10 = arith.constant 1 : index
    %c16 = arith.constant 16 : index
    %16 = vector.load %arg4[%c0_9, %c1_10, %c16] : memref<2x18x128xf32, #tpu.memory_space<vmem>>, vector<2x16x112xf32>
    tpu.vector_store %arg4[%c0_9, %c1_10, %c16], %15 {strides = array<i32>} : memref<2x18x128xf32, #tpu.memory_space<vmem>>, vector<2x16x112xf32>,
    %c0_11 = arith.constant 0 : index
    %c1_12 = arith.constant 1 : index
    %c0_13 = arith.constant 0 : index
    %17 = vector.load %arg4[%c0_11, %c1_12, %c0_13] : memref<2x18x128xf32, #tpu.memory_space<vmem>>, vector<2x16x16xf32>
    tpu.vector_store %arg4[%c0_11, %c1_12, %c0_13], %11 {strides = array<i32>} : memref<2x18x128xf32, #tpu.memory_space<vmem>>, vector<2x16x16xf32>,
    %c0_14 = arith.constant 0 : index
    %c0_15 = arith.constant 0 : index
    %c0_16 = arith.constant 0 : index
    %18 = vector.load %arg4[%c0_14, %c0_15, %c0_16] : memref<2x18x128xf32, #tpu.memory_space<vmem>>, vector<2x17x128xf32>
    %c0_17 = arith.constant 0 : index
    %c1_18 = arith.constant 1 : index
    %c0_19 = arith.constant 0 : index
    %19 = vector.load %arg4[%c0_17, %c1_18, %c0_19] : memref<2x18x128xf32, #tpu.memory_space<vmem>>, vector<2x17x128xf32>
    %20 = vector.broadcast %3 : f32 to vector<2x17x128xf32>
    %21 = arith.mulf %20, %18 : vector<2x17x128xf32>
    %c1_i32 = arith.constant 1 : i32
    %22 = tpu.dynamic_rotate %18 by %c1_i32 dim 2 : vector<2x17x128xf32>, i32 -> vector<2x17x128xf32>
    %23 = vector.broadcast %2 : f32 to vector<2x17x128xf32>
    %24 = arith.mulf %23, %22 : vector<2x17x128xf32>
    %25 = arith.addf %21, %24 : vector<2x17x128xf32>
    %26 = vector.broadcast %5 : f32 to vector<2x17x128xf32>
    %27 = arith.mulf %26, %19 : vector<2x17x128xf32>
    %28 = arith.addf %25, %27 : vector<2x17x128xf32>
    %c1_i32_20 = arith.constant 1 : i32
    %29 = tpu.dynamic_rotate %19 by %c1_i32_20 dim 2 : vector<2x17x128xf32>, i32 -> vector<2x17x128xf32>
    %30 = vector.broadcast %4 : f32 to vector<2x17x128xf32>
    %31 = arith.mulf %30, %29 : vector<2x17x128xf32>
    %32 = arith.addf %28, %31 : vector<2x17x128xf32>
    %33 = vector.broadcast %6 : f32 to vector<2x17x128xf32>
    %34 = arith.addf %32, %33 : vector<2x17x128xf32>
    %35 = vector.extract_strided_slice %34 {offsets = [0, 0, 0], sizes = [2, 17, 17], strides = [1, 1, 1]} : vector<2x17x128xf32> to vector<2x17x17xf32>
    %c0_21 = arith.constant 0 : index
    %c0_22 = arith.constant 0 : index
    %c0_23 = arith.constant 0 : index
    %36 = vector.load %arg3[%c0_21, %c0_22, %c0_23] : memref<2x17x17xf32, #tpu.memory_space<vmem>>, vector<2x17x17xf32>
    tpu.vector_store %arg3[%c0_21, %c0_22, %c0_23], %35 {strides = array<i32>} : memref<2x17x17xf32, #tpu.memory_space<vmem>>, vector<2x17x17xf32>,
    return
  }
  func.func @transform_0(%arg0: i32) -> i32 {
    %c0_i32 = arith.constant 0 : i32
    %c0_i32_0 = arith.constant 0 : i32
    return %c0_i32 : i32
  }
  func.func @transform_1(%arg0: i32) -> (i32, i32, i32) {
    %c0_i32 = arith.constant 0 : i32
    %c0_i32_0 = arith.constant 0 : i32
    %c0_i32_1 = arith.constant 0 : i32
    return %arg0, %c0_i32, %c0_i32_0 : i32, i32, i32
  }
  func.func @transform_2(%arg0: i32) -> (i32, i32, i32) {
    %c0_i32 = arith.constant 0 : i32
    %c0_i32_0 = arith.constant 0 : i32
    %c0_i32_1 = arith.constant 0 : i32
    return %arg0, %c0_i32, %c0_i32_0 : i32, i32, i32
  }
}

</mosaic_0001>

<llo_original>
// kernel: vsfe_forward.3
$region0: #{vsfe_forward.3}
  #allocation0 [shape = 'u32[]', space=smem, size = 0x4, offset = 0x4, fixed_abs, tag = 'smem constant byte address 0x4 - core index']
  #allocation1 [shape = 'u32[144,128]{1,0:T(1,128)}', space=vmem, size = 0x12000, scoped, tag = 'internal scratch']
  #allocation2 [shape = 'f32[2,18,128]{2,1,0:T(8,128)}', space=vmem, size = 0x6000, scoped, tag = 'scratch operand']
  %s0 = inlined_call_operand.vmem [shape: f32[7], index: 0, kind: input, shape index: {}]
  %s1 = inlined_call_operand.vmem [shape: f32[2,16,16], index: 1, kind: input, shape index: {}]
  %s2 = inlined_call_operand.vmem [shape: f32[2,17,17], index: 2, kind: output, shape index: {}]
  %s3 = sld [smem:[#allocation0]]
  $region22: #{vsfe_forward.3} parent=0
    _
  %s5 = ssub.s32 1, %s3
  %s6 = scalar_select 0, %s5, %s3
  $region1: #{vsfe_forward.3} parent=0
    #allocation3 [shape = 'u8[512]{0}', space=smem, size = 0x200, scoped, tag = 'input window, operand 0, single buffered']
    #allocation4 [shape = 's32[1]{0}', space=sflag, size = 0x4, scoped, tag = 'scoped memory for vsfe_forward.3']
    %7 = vsyncpa [#allocation4], 0
    // Predicated region
    $region2: #{vsfe_forward.3} parent=1 // pred_check
      _
    $region3: #{vsfe_forward.3} parent=1 // pred_check_branch
      %9 = sbr.rel (0) target = $region5
    $region4: #{vsfe_forward.3} parent=1 // pred_region
      %s11 = ssub.s32 16, 16
      %12 = vsyncadd [#allocation4], %s11
      %s14 = sshll.u32 %s0, 4
      %s15 = int_to_ptr.vmem [resolvable:$true] %s14
      %17 = dma.vmem_to_smem %s15, 16, [#allocation3], [#allocation4]
    $region5: #{vsfe_forward.3} parent=1 // pred_fallthru
      _
    // Predicated region
    $region6: #{vsfe_forward.3} parent=1 // pred_check
      _
    $region7: #{vsfe_forward.3} parent=1 // pred_check_branch
      %19 = sbr.rel (0) target = $region9
    $region8: #{vsfe_forward.3} parent=1 // pred_region
      _
    $region9: #{vsfe_forward.3} parent=1 // pred_fallthru
      _
    // Predicated region
    $region10: #{vsfe_forward.3} parent=1 // pred_check
      _
    $region11: #{vsfe_forward.3} parent=1 // pred_check_branch
      %21 = sbr.rel (0) target = $region13
    $region12: #{vsfe_forward.3} parent=1 // pred_region
      %22 = dma.done [#allocation4], 16
    $region13: #{vsfe_forward.3} parent=1 // pred_fallthru
      _
    %23 = sfence
    %s24 = sld [smem:[#allocation3]]
    %s25 = sld [smem:[#allocation3 + $0x1]]
    %s26 = sld [smem:[#allocation3 + $0x2]]
    %s27 = sld [smem:[#allocation3 + $0x3]]
    %s28 = sld [smem:[#allocation3 + $0x4]]
    %s29 = sld [smem:[#allocation3 + $0x5]]
    %s30 = sld [smem:[#allocation3 + $0x6]]
    %v31 = vld [vmem:[%s1] sm:$0xff]
    %v32 = vld [vmem:[%s1 + $0x8] sm:$0xff]
    %v33 = vld [vmem:[%s1 + $0x10] sm:$0xff]
    %v34 = vld [vmem:[%s1 + $0x18] sm:$0xff]
    %v35 = vstv %s24
    %v36 = vmul.f32 %v31, %v35
    %v37 = vmul.f32 %v32, %v35
    %v38 = vmul.f32 %v33, %v35
    %v39 = vmul.f32 %v34, %v35
    %v40 = vstv %s25
    %v41 = vadd.f32 %v36, %v40
    %v42 = vadd.f32 %v37, %v40
    %v43 = vadd.f32 %v38, %v40
    %v44 = vadd.f32 %v39, %v40
    %45 = vst [vmem:[#allocation2] sm:$0x1] 0.0
    %46 = vst [vmem:[#allocation2 + $0x18] sm:$0x1] 0.0
    %47 = vst [vmem:[#allocation2 + $0x11] sm:$0x1] 0.0
    %48 = vst [vmem:[#allocation2 + $0x29] sm:$0x1] 0.0
    %vm49 = vcmask 1047680
    %50 = vst.msk [vmem:[#allocation2 + $0x1] sm:$0xff] %vm49, 0.0
    %51 = vst.msk [vmem:[#allocation2 + $0x9] sm:$0xff] %vm49, 0.0
    %52 = vst.msk [vmem:[#allocation2 + $0x19] sm:$0xff] %vm49, 0.0
    %53 = vst.msk [vmem:[#allocation2 + $0x21] sm:$0xff] %vm49, 0.0
    %vm54 = vcmask 130048
    %55 = vst.msk [vmem:[#allocation2 + $0x1] sm:$0xff] %vm54, %v41
    %56 = vst.msk [vmem:[#allocation2 + $0x9] sm:$0xff] %vm54, %v42
    %57 = vst.msk [vmem:[#allocation2 + $0x19] sm:$0xff] %vm54, %v43
    %58 = vst.msk [vmem:[#allocation2 + $0x21] sm:$0xff] %vm54, %v44
    %v59 = vld [vmem:[#allocation2] sm:$0xff]
    %v60 = vld [vmem:[#allocation2 + $0x8] sm:$0xff]
    %v61 = vld [vmem:[#allocation2 + $0x10] sm:$0x1]
    %v62 = vld [vmem:[#allocation2 + $0x18] sm:$0xff]
    %v63 = vld [vmem:[#allocation2 + $0x20] sm:$0xff]
    %v64 = vld [vmem:[#allocation2 + $0x28] sm:$0x1]
    %v65 = vld [vmem:[#allocation2 + $0x1] sm:$0xff]
    %v66 = vld [vmem:[#allocation2 + $0x9] sm:$0xff]
    %v67 = vld [vmem:[#allocation2 + $0x11] sm:$0x1]
    %v68 = vld [vmem:[#allocation2 + $0x19] sm:$0xff]
    %v69 = vld [vmem:[#allocation2 + $0x21] sm:$0xff]
    %v70 = vld [vmem:[#allocation2 + $0x29] sm:$0x1]
    %v71 = vstv %s27
    %v72 = vmul.f32 %v71, %v59
    %v73 = vmul.f32 %v71, %v60
    %v74 = vmul.f32 %v71, %v61
    %v75 = vmul.f32 %v71, %v62
    %v76 = vmul.f32 %v71, %v63
    %v77 = vmul.f32 %v71, %v64
    %78 = vrot.lane.b32.xlu0 %v59, 1
    %v79 = vpop.permute.xlu0 %78
    %80 = vrot.lane.b32.xlu0 %v60, 1
    %v81 = vpop.permute.xlu0 %80
    %82 = vrot.lane.b32.xlu0 %v61, 1
    %v83 = vpop.permute.xlu0 %82
    %84 = vrot.lane.b32.xlu0 %v62, 1
    %v85 = vpop.permute.xlu0 %84
    %86 = vrot.lane.b32.xlu0 %v63, 1
    %v87 = vpop.permute.xlu0 %86
    %88 = vrot.lane.b32.xlu0 %v64, 1
    %v89 = vpop.permute.xlu0 %88
    %v90 = vstv %s26
    %v91 = vmul.f32 %v90, %v79
    %v92 = vmul.f32 %v90, %v81
    %v93 = vmul.f32 %v90, %v83
    %v94 = vmul.f32 %v90, %v85
    %v95 = vmul.f32 %v90, %v87
    %v96 = vmul.f32 %v90, %v89
    %v97 = vadd.f32 %v72, %v91
    %v98 = vadd.f32 %v73, %v92
    %v99 = vadd.f32 %v74, %v93
    %v100 = vadd.f32 %v75, %v94
    %v101 = vadd.f32 %v76, %v95
    %v102 = vadd.f32 %v77, %v96
    %v103 = vstv %s29
    %v104 = vmul.f32 %v103, %v65
    %v105 = vmul.f32 %v103, %v66
    %v106 = vmul.f32 %v103, %v67
    %v107 = vmul.f32 %v103, %v68
    %v108 = vmul.f32 %v103, %v69
    %v109 = vmul.f32 %v103, %v70
    %v110 = vadd.f32 %v97, %v104
    %v111 = vadd.f32 %v98, %v105
    %v112 = vadd.f32 %v99, %v106
    %v113 = vadd.f32 %v100, %v107
    %v114 = vadd.f32 %v101, %v108
    %v115 = vadd.f32 %v102, %v109
    %116 = vrot.lane.b32.xlu0 %v65, 1
    %v117 = vpop.permute.xlu0 %116
    %118 = vrot.lane.b32.xlu0 %v66, 1
    %v119 = vpop.permute.xlu0 %118
    %120 = vrot.lane.b32.xlu0 %v67, 1
    %v121 = vpop.permute.xlu0 %120
    %122 = vrot.lane.b32.xlu0 %v68, 1
    %v123 = vpop.permute.xlu0 %122
    %124 = vrot.lane.b32.xlu0 %v69, 1
    %v125 = vpop.permute.xlu0 %124
    %126 = vrot.lane.b32.xlu0 %v70, 1
    %v127 = vpop.permute.xlu0 %126
    %v128 = vstv %s28
    %v129 = vmul.f32 %v128, %v117
    %v130 = vmul.f32 %v128, %v119
    %v131 = vmul.f32 %v128, %v121
    %v132 = vmul.f32 %v128, %v123
    %v133 = vmul.f32 %v128, %v125
    %v134 = vmul.f32 %v128, %v127
    %v135 = vadd.f32 %v110, %v129
    %v136 = vadd.f32 %v111, %v130
    %v137 = vadd.f32 %v112, %v131
    %v138 = vadd.f32 %v113, %v132
    %v139 = vadd.f32 %v114, %v133
    %v140 = vadd.f32 %v115, %v134
    %v141 = vstv %s30
    %v142 = vadd.f32 %v135, %v141
    %v143 = vadd.f32 %v136, %v141
    %v144 = vadd.f32 %v137, %v141
    %v145 = vadd.f32 %v138, %v141
    %v146 = vadd.f32 %v139, %v141
    %v147 = vadd.f32 %v140, %v141
    %vm148 = vcmask 138240
    %149 = vst.msk [vmem:[%s2] sm:$0xff] %vm148, %v142
    %150 = vst.msk [vmem:[%s2 + $0x8] sm:$0xff] %vm148, %v143
    %vm151 = vcmask 131072
    %152 = vst.msk [vmem:[%s2 + $0x10] sm:$0x1] %vm151, %v144
    %153 = vst.msk [vmem:[%s2 + $0x18] sm:$0xff] %vm148, %v145
    %154 = vst.msk [vmem:[%s2 + $0x20] sm:$0xff] %vm148, %v146
    %155 = vst.msk [vmem:[%s2 + $0x28] sm:$0x1] %vm151, %v147
    // Predicated region
    $region14: #{vsfe_forward.3} parent=1 // pred_check
      _
    $region15: #{vsfe_forward.3} parent=1 // pred_check_branch
      %157 = sbr.rel (0) target = $region17
    $region16: #{vsfe_forward.3} parent=1 // pred_region
      _
    $region17: #{vsfe_forward.3} parent=1 // pred_fallthru
      _
    // Predicated region
    $region18: #{vsfe_forward.3} parent=1 // pred_check
      _
    $region19: #{vsfe_forward.3} parent=1 // pred_check_branch
      %159 = sbr.rel (0) target = $region21
    $region20: #{vsfe_forward.3} parent=1 // pred_region
      _
    $region21: #{vsfe_forward.3} parent=1 // pred_fallthru
      _
    %160 = vsyncpa [#allocation4], 1

// kernel: vsfe_forward.2
$region0: #{vsfe_forward.2}
  #allocation0 [shape = 'u32[]', space=smem, size = 0x4, offset = 0x4, fixed_abs, tag = 'smem constant byte address 0x4 - core index']
  #allocation1 [shape = 'u32[144,128]{1,0:T(1,128)}', space=vmem, size = 0x12000, scoped, tag = 'internal scratch']
  %s0 = inlined_call_operand.vmem [shape: f32[2], index: 0, kind: input, shape index: {}]
  %s1 = inlined_call_operand.vmem [shape: f32[2,256], index: 1, kind: input, shape index: {}]
  %s2 = inlined_call_operand.vmem [shape: f32[2,256], index: 2, kind: output, shape index: {}]
  %s3 = sld [smem:[#allocation0]]
  $region22: #{vsfe_forward.2} parent=0
    _
  %s5 = ssub.s32 1, %s3
  %s6 = scalar_select 0, %s5, %s3
  $region1: #{vsfe_forward.2} parent=0
    #allocation2 [shape = 'u8[512]{0}', space=smem, size = 0x200, scoped, tag = 'input window, operand 0, single buffered']
    #allocation3 [shape = 's32[1]{0}', space=sflag, size = 0x4, scoped, tag = 'scoped memory for vsfe_forward.2']
    %7 = vsyncpa [#allocation3], 0
    // Predicated region
    $region2: #{vsfe_forward.2} parent=1 // pred_check
      _
    $region3: #{vsfe_forward.2} parent=1 // pred_check_branch
      %9 = sbr.rel (0) target = $region5
    $region4: #{vsfe_forward.2} parent=1 // pred_region
      %s11 = ssub.s32 16, 16
      %12 = vsyncadd [#allocation3], %s11
      %s14 = sshll.u32 %s0, 4
      %s15 = int_to_ptr.vmem [resolvable:$true] %s14
      %17 = dma.vmem_to_smem %s15, 16, [#allocation2], [#allocation3]
    $region5: #{vsfe_forward.2} parent=1 // pred_fallthru
      _
    // Predicated region
    $region6: #{vsfe_forward.2} parent=1 // pred_check
      _
    $region7: #{vsfe_forward.2} parent=1 // pred_check_branch
      %19 = sbr.rel (0) target = $region9
    $region8: #{vsfe_forward.2} parent=1 // pred_region
      _
    $region9: #{vsfe_forward.2} parent=1 // pred_fallthru
      _
    // Predicated region
    $region10: #{vsfe_forward.2} parent=1 // pred_check
      _
    $region11: #{vsfe_forward.2} parent=1 // pred_check_branch
      %21 = sbr.rel (0) target = $region13
    $region12: #{vsfe_forward.2} parent=1 // pred_region
      %22 = dma.done [#allocation3], 16
    $region13: #{vsfe_forward.2} parent=1 // pred_fallthru
      _
    %23 = sfence
    %v24 = vld [vmem:[%s1] sm:$0xf]
    %s25 = sld [smem:[#allocation2]]
    %v26 = vstv %s25
    %v27 = vmul.f32 %v24, %v26
    %s28 = sld [smem:[#allocation2 + $0x1]]
    %v29 = vstv %s28
    %v30 = vadd.f32 %v27, %v29
    %v31 = vmul.f32 %v30, 0.70710677
    %vm32 = vcmp.ge.f32.partialorder %v31, 0.0
    %v33 = vsel %vm32, 1.0, -1.0
    %v34 = vand.u32 2147483647, %v31
    %v35 = vmul.f32 %v34, 0.3275911
    %v36 = vadd.f32 %v35, 1.0
    %v37 = vrcp.pop %v36
    %v38 = vmul.f32 %v36, %v37
    %v39 = vsub.f32 2.0, %v38
    %v40 = vmul.f32 %v37, %v39
    %v41 = vmul.f32 %v40, 1.0614054
    %v42 = vadd.f32 %v41, -1.4531521
    %v43 = vmul.f32 %v42, %v40
    %v44 = vadd.f32 %v43, 1.4214138
    %v45 = vmul.f32 %v44, %v40
    %v46 = vadd.f32 %v45, -0.28449672
    %v47 = vmul.f32 %v46, %v40
    %v48 = vadd.f32 %v47, 0.2548296
    %v49 = vmul.f32 %v48, %v40
    %v50 = vsub.f32 0.0, %v34
    %v51 = vmul.f32 %v50, %v34
    %v52 = vmul.f32 %v51, 1.442695
    %v53 = vpow.pop %v52
    %v54 = vmul.f32 %v49, %v53
    %v55 = vsub.f32 1.0, %v54
    %v56 = vmul.f32 %v33, %v55
    %v57 = vmul.f32 %v30, 0.5
    %v58 = vadd.f32 %v56, 1.0
    %v59 = vmul.f32 %v57, %v58
    %60 = vst [vmem:[%s2] sm:$0xf] %v59
    // Predicated region
    $region14: #{vsfe_forward.2} parent=1 // pred_check
      _
    $region15: #{vsfe_forward.2} parent=1 // pred_check_branch
      %62 = sbr.rel (0) target = $region17
    $region16: #{vsfe_forward.2} parent=1 // pred_region
      _
    $region17: #{vsfe_forward.2} parent=1 // pred_fallthru
      _
    // Predicated region
    $region18: #{vsfe_forward.2} parent=1 // pred_check
      _
    $region19: #{vsfe_forward.2} parent=1 // pred_check_branch
      %64 = sbr.rel (0) target = $region21
    $region20: #{vsfe_forward.2} parent=1 // pred_region
      _
    $region21: #{vsfe_forward.2} parent=1 // pred_fallthru
      _
    %65 = vsyncpa [#allocation3], 1

</llo_original>
